<compile_context>
chip_gen: v5e
topology: v5e:2x2
jax: 0.10.0
libtpu: 0.0.40
codegen_flags: <defaults>
</compile_context>

<pallas_src>
import functools
import math

import numpy as np
import jax
import jax.numpy as jnp
from jax.experimental import pallas as pl
from jax.experimental.pallas import tpu as pltpu


def _round_up(x: int, m: int) -> int:
    return ((x + m - 1) // m) * m


def _pick_batch_tile(B: int) -> int:
    """Batch tile (multiple of 16, <=256): minimize padded rows, and when
    B > 16 prefer >=2 grid steps so v7x's second TensorCore gets work."""
    B16 = _round_up(max(B, 1), 16)
    if B16 <= 16:
        return 16
    cap = min(256, _round_up((B16 + 1) // 2, 16))        # keep >=2 grid steps
    best_tb, best_pad = 16, _round_up(B16, 16) - B16
    for tb in (256, 128, 64, 32):
        if tb > cap:
            continue
        pad = _round_up(B16, tb) - B16
        if pad < best_pad or (pad == best_pad and tb > best_tb):
            best_tb, best_pad = tb, pad
    return best_tb


def _vmem_capacity_bytes() -> int:
    try:
        cap = int(pltpu.get_tpu_info().vmem_capacity_bytes)
        if cap > 0:
            return cap
    except Exception:
        pass
    return 64 * 1024 * 1024     # conservative fallback (v7x per-TC VMEM)


# ----------------------------- Pallas kernel --------------------------------

def _dmvn_kernel(x_ref, wb_ref, bb_ref, wh_ref, bh_ref, out_ref, *,
                 h_chunk: int, diag_start: int, diag_stop: int):
    x = x_ref[...]                                   # (TB, K) bf16
    tb = x.shape[0]
    n = out_ref.shape[1]
    n_chunks = wb_ref.shape[1] // h_chunk

    # Backbone + fused heads streamed over H in MXU-native 256-wide chunks.
    # The hidden chunk stays in vregs (no (TB, H) VMEM scratch round trip).
    y = jnp.zeros((tb, n), jnp.float32)
    for c in range(n_chunks):                        # static slices -> views
        hs = c * h_chunk
        h = jnp.dot(x, wb_ref[:, hs:hs + h_chunk],
                    preferred_element_type=jnp.float32)
        h = jnp.maximum(h + bb_ref[:, hs:hs + h_chunk], 0.0)
        y = y + jnp.dot(h.astype(wh_ref.dtype), wh_ref[hs:hs + h_chunk, :],
                        preferred_element_type=jnp.float32)
    y = y + bh_ref[...]

    # softplus only on the logdiag lanes (VPU select + EUP exp/log).
    col = jax.lax.broadcasted_iota(jnp.int32, y.shape, dimension=1)
    in_diag = (col >= diag_start) & (col < diag_stop)
    y = jnp.where(in_diag, jnp.logaddexp(y, 0.0), y)

    out_ref[...] = y.astype(out_ref.dtype)


# ------------------------------- wrapper -------------------------------------

def deep_mvn_forward(x, fp):
    """Returns (mean, scale_tril) exactly like DeepMultivariateNormal.forward.

    x : (B, in_dim) float32 (flattened backbone input)
    fp: dict from fuse_and_pad_params (padded bf16 weights, f32 biases, scatter S)
    """
    B, in_dim = x.shape
    K, H = fp["wb"].shape                 # padded in_dim, padded hidden_dim
    N = fp["wh"].shape[1]                 # padded fused-head output width
    D = int(math.isqrt(fp["S"].shape[1]))         # latent_dim
    cov = D * (D - 1) // 2
    diag_start, diag_stop = D + cov, 2 * D + cov

    TB = _pick_batch_tile(B)
    B_pad = _round_up(B, TB)
    HC = 256                              # H streamed in 256-wide chunks

    xp = x.astype(jnp.bfloat16)
    if B_pad != B or K != in_dim:         # pad only when shapes require it
        xp = jnp.pad(xp, ((0, B_pad - B), (0, K - in_dim)))

    # Exact VMEM budget: streamed tiles double-buffered, resident weights
    # single-buffered (pipeline_mode=pl.Buffered(1)); biases pad to 8 sublanes.
    vmem_bytes = (
        2 * TB * K * 2            # x tile (bf16), double-buffered
        + 2 * TB * N * 4          # out tile (f32), double-buffered
        + K * H * 2               # wb (bf16), resident, single-buffered
        + H * N * 2               # wh (bf16), resident, single-buffered
        + 8 * (H + N) * 4         # bb/bh (f32), resident, single-buffered
    )
    vmem_cap = _vmem_capacity_bytes()
    vmem_limit = min(int(0.85 * vmem_cap), max(vmem_bytes + (4 << 20), 16 << 20))

    resident = dict(pipeline_mode=pl.Buffered(1))
    grid = (B_pad // TB,)
    y = pl.pallas_call(
        functools.partial(_dmvn_kernel, h_chunk=HC,
                          diag_start=diag_start, diag_stop=diag_stop),
        out_shape=jax.ShapeDtypeStruct((B_pad, N), jnp.float32),
        grid_spec=pltpu.PrefetchScalarGridSpec(
            num_scalar_prefetch=0,
            grid=grid,
            in_specs=[
                pl.BlockSpec((TB, K), lambda i: (i, 0)),                # x: streamed
                pl.BlockSpec((K, H), lambda i: (0, 0), **resident),     # wb
                pl.BlockSpec((1, H), lambda i: (0, 0), **resident),     # bb
                pl.BlockSpec((H, N), lambda i: (0, 0), **resident),     # wh (fused heads)
                pl.BlockSpec((1, N), lambda i: (0, 0), **resident),     # bh (fused biases)
            ],
            out_specs=pl.BlockSpec((TB, N), lambda i: (i, 0)),
        ),
        compiler_params=pltpu.CompilerParams(
            dimension_semantics=("parallel",),
            vmem_limit_bytes=vmem_limit,
        ),
    )(xp, fp["wb"], fp["bb"], fp["wh"], fp["bh"])

    y = y[:B]                                   # drop batch padding
    mean = y[:, :D]
    # scale_tril via dense scatter matmul: lanes [D, D+cov) -> strict lower,
    # lanes [D+cov, 2D+cov) -> diagonal (softplus already applied in-kernel).
    L = jnp.dot(y, fp["S"]).reshape(B, D, D)
    return mean, L


# ------------------------------ parameter init ------------------------------

def init_params(key, in_dim, hidden_dim, latent_dim):
    """PyTorch-style (fan_in uniform) f32 params, weights stored as (in, out)."""
    cov_lower_dim = latent_dim * (latent_dim - 1) // 2
    ks = jax.random.split(key, 8)

    def lin(kw, kb, fan_in, fan_out):
        bound = 1.0 / np.sqrt(fan_in)
        w = jax.random.uniform(kw, (fan_in, fan_out), jnp.float32, -bound, bound)
        b = jax.random.uniform(kb, (1, fan_out), jnp.float32, -bound, bound)
        return w, b

    wb, bb = lin(ks[0], ks[1], in_dim, hidden_dim)         # backbone linear
    wm, bm = lin(ks[2], ks[3], hidden_dim, latent_dim)     # mean_head
    wl, bl = lin(ks[4], ks[5], hidden_dim, cov_lower_dim)  # lower_head
    wd, bd = lin(ks[6], ks[7], hidden_dim, latent_dim)     # logdiag_head
    return dict(wb=wb, bb=bb, wm=wm, bm=bm, wl=wl, bl=bl, wd=wd, bd=bd)


def fuse_and_pad_params(params, latent_dim):
    """Fuse the three heads along N, pad to MXU-aligned shapes, cast to bf16.

    K/H are padded to multiples of 256 (v6e/v7x MXU is 2x256^2; harmless on
    v5e's 4x128^2); the fused-head width N to one 128-lane group.
    """
    in_dim, hidden_dim = params["wb"].shape
    cov = latent_dim * (latent_dim - 1) // 2
    n_out = 2 * latent_dim + cov                      # [mean | lower | logdiag]

    K = _round_up(in_dim, 256)
    H = _round_up(hidden_dim, 256)
    N = _round_up(n_out, 128)

    wb = jnp.zeros((K, H), jnp.bfloat16).at[:in_dim, :hidden_dim].set(
        params["wb"].astype(jnp.bfloat16))
    bb = jnp.zeros((1, H), jnp.float32).at[:, :hidden_dim].set(params["bb"])

    wh_log = jnp.concatenate([params["wm"], params["wl"], params["wd"]], axis=1)
    bh_log = jnp.concatenate([params["bm"], params["bl"], params["bd"]], axis=1)
    wh = jnp.zeros((H, N), jnp.bfloat16).at[:hidden_dim, :n_out].set(
        wh_log.astype(jnp.bfloat16))
    bh = jnp.zeros((1, N), jnp.float32).at[:, :n_out].set(bh_log)

    # Constant scatter matrix: fused-head lanes -> flattened (latent, latent) L.
    # np.tril_indices(k=-1) is row-major, matching torch.tril_indices(offset=-1).
    S = np.zeros((N, latent_dim * latent_dim), np.float32)
    i, j = np.tril_indices(latent_dim, k=-1)
    S[latent_dim + np.arange(cov), i * latent_dim + j] = 1.0     # strict lower
    d = np.arange(latent_dim)
    S[latent_dim + cov + d, d * latent_dim + d] = 1.0            # diagonal

    return dict(wb=wb, bb=bb, wh=wh, bh=bh, S=jnp.asarray(S))


# ---------------------------------- main -------------------------------------

if __name__ == "__main__":
    key = jax.random.PRNGKey(0)
    k_x, k_p = jax.random.split(key)

    batch, in_dim, hidden_dim, latent_dim = 8, 16, 32, 4
    x = jax.random.normal(k_x, (batch, in_dim), jnp.float32)
    params = init_params(k_p, in_dim, hidden_dim, latent_dim)
    fp = fuse_and_pad_params(params, latent_dim)

    mean, scale_tril = jax.jit(deep_mvn_forward)(x, fp)
    jax.block_until_ready((mean, scale_tril))

    # Pure-JAX reference with matching numerics (bf16 operands, f32 accumulate).
    bf = lambda a: a.astype(jnp.bfloat16)
    h_ref = jnp.maximum(
        jnp.dot(bf(x), bf(params["wb"]), preferred_element_type=jnp.float32)
        + params["bb"], 0.0)
    hb = bf(h_ref)
    mean_ref = jnp.dot(hb, bf(params["wm"]), preferred_element_type=jnp.float32) + params["bm"]
    lower_ref = jnp.dot(hb, bf(params["wl"]), preferred_element_type=jnp.float32) + params["bl"]
    diag_ref = jnp.logaddexp(
        jnp.dot(hb, bf(params["wd"]), preferred_element_type=jnp.float32) + params["bd"], 0.0)
    i, j = np.tril_indices(latent_dim, k=-1)
    L_ref = diag_ref[:, :, None] * jnp.eye(latent_dim, dtype=jnp.float32)[None]
    L_ref = L_ref.at[:, i, j].set(lower_ref)

    assert mean.shape == (batch, latent_dim)
    assert scale_tril.shape == (batch, latent_dim, latent_dim)
    np.testing.assert_allclose(np.asarray(mean), np.asarray(mean_ref), rtol=1e-2, atol=1e-2)
    np.testing.assert_allclose(np.asarray(scale_tril), np.asarray(L_ref), rtol=1e-2, atol=1e-2)

    print("KERNEL_OK")
</pallas_src>

<mosaic_0001>
module attributes {stable_mosaic.version = 11 : i64} {
  func.func @_dmvn_kernel(%arg0: i32, %arg1: memref<16x256xbf16, #tpu.memory_space<vmem>>, %arg2: memref<256x256xbf16, #tpu.memory_space<vmem>>, %arg3: memref<1x256xf32, #tpu.memory_space<vmem>>, %arg4: memref<256x128xbf16, #tpu.memory_space<vmem>>, %arg5: memref<1x128xf32, #tpu.memory_space<vmem>>, %arg6: memref<16x128xf32, #tpu.memory_space<vmem>>) attributes {dimension_semantics = [#tpu.dimension_semantics<parallel>], iteration_bounds = array<i64: 1>, scalar_prefetch = 0 : i64, scratch_operands = 0 : i64, tpu.core_type = #tpu.core_type<tc>, window_params = [{transform_indices = @transform_0, window_bounds = array<i64: 16, 256>}, {pipeline_mode = #tpu.pipeline_mode<synchronous>, transform_indices = @transform_1, window_bounds = array<i64: 256, 256>}, {pipeline_mode = #tpu.pipeline_mode<synchronous>, transform_indices = @transform_2, window_bounds = array<i64: 1, 256>}, {pipeline_mode = #tpu.pipeline_mode<synchronous>, transform_indices = @transform_3, window_bounds = array<i64: 256, 128>}, {pipeline_mode = #tpu.pipeline_mode<synchronous>, transform_indices = @transform_4, window_bounds = array<i64: 1, 128>}, {transform_indices = @transform_5, window_bounds = array<i64: 16, 128>}]} {
    %c0 = arith.constant 0 : index
    %c0_0 = arith.constant 0 : index
    %0 = vector.load %arg1[%c0, %c0_0] : memref<16x256xbf16, #tpu.memory_space<vmem>>, vector<16x256xbf16>
    %cst = arith.constant 0.000000e+00 : f32
    %1 = vector.broadcast %cst : f32 to vector<16x128xf32>
    %c0_1 = arith.constant 0 : index
    %c0_2 = arith.constant 0 : index
    %2 = vector.load %arg2[%c0_1, %c0_2] : memref<256x256xbf16, #tpu.memory_space<vmem>>, vector<256x256xbf16>
    %cst_3 = arith.constant dense<0.000000e+00> : vector<16x256xf32>
    %3 = tpu.matmul %0, %2, %cst_3 {dimension_numbers = #tpu.dot_dimension_numbers<[1], [0], [0], [1], [0, 0, 1, 1], [], []>} : vector<16x256xbf16>, vector<256x256xbf16>, vector<16x256xf32> -> vector<16x256xf32>
    %c0_4 = arith.constant 0 : index
    %c0_5 = arith.constant 0 : index
    %4 = vector.load %arg3[%c0_4, %c0_5] : memref<1x256xf32, #tpu.memory_space<vmem>>, vector<1x256xf32>
    %5 = vector.broadcast %4 : vector<1x256xf32> to vector<16x256xf32>
    %6 = arith.addf %3, %5 : vector<16x256xf32>
    %cst_6 = arith.constant 0.000000e+00 : f32
    %7 = vector.broadcast %cst_6 : f32 to vector<16x256xf32>
    %8 = arith.maximumf %6, %7 : vector<16x256xf32>
    %9 = arith.truncf %8 : vector<16x256xf32> to vector<16x256xbf16>
    %c0_7 = arith.constant 0 : index
    %c0_8 = arith.constant 0 : index
    %10 = vector.load %arg4[%c0_7, %c0_8] : memref<256x128xbf16, #tpu.memory_space<vmem>>, vector<256x128xbf16>
    %cst_9 = arith.constant dense<0.000000e+00> : vector<16x128xf32>
    %11 = tpu.matmul %9, %10, %cst_9 {dimension_numbers = #tpu.dot_dimension_numbers<[1], [0], [0], [1], [0, 0, 1, 1], [], []>} : vector<16x256xbf16>, vector<256x128xbf16>, vector<16x128xf32> -> vector<16x128xf32>
    %12 = arith.addf %1, %11 : vector<16x128xf32>
    %c0_10 = arith.constant 0 : index
    %c0_11 = arith.constant 0 : index
    %13 = vector.load %arg5[%c0_10, %c0_11] : memref<1x128xf32, #tpu.memory_space<vmem>>, vector<1x128xf32>
    %14 = vector.broadcast %13 : vector<1x128xf32> to vector<16x128xf32>
    %15 = arith.addf %12, %14 : vector<16x128xf32>
    %16 = tpu.iota {dimensions = array<i32: 1>} : vector<16x128xi32>
    %c10_i32 = arith.constant 10 : i32
    %17 = vector.broadcast %c10_i32 : i32 to vector<16x128xi32>
    %18 = arith.cmpi sge, %16, %17 : vector<16x128xi32>
    %c14_i32 = arith.constant 14 : i32
    %19 = vector.broadcast %c14_i32 : i32 to vector<16x128xi32>
    %20 = arith.cmpi slt, %16, %19 : vector<16x128xi32>
    %21 = arith.andi %18, %20 : vector<16x128xi1>
    %cst_12 = arith.constant 0.000000e+00 : f32
    %22 = vector.broadcast %cst_12 : f32 to vector<16x128xf32>
    %23 = arith.maximumf %15, %22 : vector<16x128xf32>
    %24 = vector.broadcast %cst_12 : f32 to vector<16x128xf32>
    %25 = arith.subf %15, %24 : vector<16x128xf32>
    %26 = arith.cmpf one, %25, %25 : vector<16x128xf32>
    %27 = vector.broadcast %cst_12 : f32 to vector<16x128xf32>
    %28 = arith.addf %15, %27 : vector<16x128xf32>
    %29 = math.absf %25 : vector<16x128xf32>
    %cst_13 = arith.constant 0.000000e+00 : f32
    %30 = vector.broadcast %cst_13 : f32 to vector<16x128xf32>
    %31 = arith.subf %30, %29 : vector<16x128xf32>
    %32 = math.exp %31 : vector<16x128xf32>
    %33 = math.log1p %32 : vector<16x128xf32>
    %34 = arith.addf %23, %33 : vector<16x128xf32>
    %35 = arith.select %26, %28, %34 : vector<16x128xi1>, vector<16x128xf32>
    %36 = arith.select %21, %35, %15 : vector<16x128xi1>, vector<16x128xf32>
    %c0_14 = arith.constant 0 : index
    %c0_15 = arith.constant 0 : index
    %37 = vector.load %arg6[%c0_14, %c0_15] : memref<16x128xf32, #tpu.memory_space<vmem>>, vector<16x128xf32>
    tpu.vector_store %arg6[%c0_14, %c0_15], %36 {strides = array<i32>} : memref<16x128xf32, #tpu.memory_space<vmem>>, vector<16x128xf32>,
    return
  }
  func.func @transform_0(%arg0: i32) -> (i32, i32) {
    %c0_i32 = arith.constant 0 : i32
    %c0_i32_0 = arith.constant 0 : i32
    return %arg0, %c0_i32 : i32, i32
  }
  func.func @transform_1(%arg0: i32) -> (i32, i32) {
    %c0_i32 = arith.constant 0 : i32
    %c0_i32_0 = arith.constant 0 : i32
    %c0_i32_1 = arith.constant 0 : i32
    return %c0_i32, %c0_i32_0 : i32, i32
  }
  func.func @transform_2(%arg0: i32) -> (i32, i32) {
    %c0_i32 = arith.constant 0 : i32
    %c0_i32_0 = arith.constant 0 : i32
    %c0_i32_1 = arith.constant 0 : i32
    return %c0_i32, %c0_i32_0 : i32, i32
  }
  func.func @transform_3(%arg0: i32) -> (i32, i32) {
    %c0_i32 = arith.constant 0 : i32
    %c0_i32_0 = arith.constant 0 : i32
    %c0_i32_1 = arith.constant 0 : i32
    return %c0_i32, %c0_i32_0 : i32, i32
  }
  func.func @transform_4(%arg0: i32) -> (i32, i32) {
    %c0_i32 = arith.constant 0 : i32
    %c0_i32_0 = arith.constant 0 : i32
    %c0_i32_1 = arith.constant 0 : i32
    return %c0_i32, %c0_i32_0 : i32, i32
  }
  func.func @transform_5(%arg0: i32) -> (i32, i32) {
    %c0_i32 = arith.constant 0 : i32
    %c0_i32_0 = arith.constant 0 : i32
    return %arg0, %c0_i32 : i32, i32
  }
}

</mosaic_0001>

<llo_original>
// kernel: deep_mvn_forward.1
$region0: #{deep_mvn_forward.1}
  #allocation0 [shape = 'u32[]', space=smem, size = 0x4, offset = 0x4, fixed_abs, tag = 'smem constant byte address 0x4 - core index']
  #allocation1 [shape = 'u32[72,128]{1,0:T(1,128)}', space=vmem, size = 0x9000, scoped, tag = 'internal scratch']
  %s0 = inlined_call_operand.vmem [shape: bf16[16,256], index: 0, kind: input, shape index: {}]
  %s1 = inlined_call_operand.hbm [shape: bf16[256,256], index: 1, kind: input, shape index: {}]
  %s2 = inlined_call_operand.vmem [shape: f32[1,256], index: 2, kind: input, shape index: {}]
  %s3 = inlined_call_operand.hbm [shape: bf16[256,128], index: 3, kind: input, shape index: {}]
  %s4 = inlined_call_operand.vmem [shape: f32[1,128], index: 4, kind: input, shape index: {}]
  %s5 = inlined_call_operand.vmem [shape: f32[16,128], index: 5, kind: output, shape index: {}]
  %s6 = sld [smem:[#allocation0]]
  $region38: #{deep_mvn_forward.1} parent=0
    _
  %s8 = ssub.s32 1, %s6
  %s9 = scalar_select 0, %s8, %s6
  $region1: #{deep_mvn_forward.1} parent=0
    #allocation2 [shape = 'u8[131072]{0}', space=vmem, size = 0x20000, scoped, tag = 'input window, operand 1, single buffered']
    #allocation3 [shape = 's32[1]{0}', space=sflag, size = 0x4, scoped, tag = 'scoped memory for deep_mvn_forward.1']
    #allocation4 [shape = 'u8[65536]{0}', space=vmem, size = 0x10000, scoped, tag = 'input window, operand 3, single buffered']
    #allocation5 [shape = 's32[1]{0}', space=sflag, size = 0x4, scoped, tag = 'scoped memory for deep_mvn_forward.1']
    %10 = vsyncpa [#allocation3], 0
    %11 = vsyncpa [#allocation5], 0
    // Predicated region
    $region2: #{deep_mvn_forward.1} parent=1 // pred_check
      _
    $region3: #{deep_mvn_forward.1} parent=1 // pred_check_branch
      %13 = sbr.rel (0) target = $region5
    $region4: #{deep_mvn_forward.1} parent=1 // pred_region
      _
    $region5: #{deep_mvn_forward.1} parent=1 // pred_fallthru
      _
    // Predicated region
    $region6: #{deep_mvn_forward.1} parent=1 // pred_check
      _
    $region7: #{deep_mvn_forward.1} parent=1 // pred_check_branch
      %15 = sbr.rel (0) target = $region9
    $region8: #{deep_mvn_forward.1} parent=1 // pred_region
      %17 = vsyncadd [#allocation3], 0
      %s18 = sshll.u32 %s1, 4
      %s19 = int_to_ptr.hbm [resolvable:$true] %s18
      %s20 = sshll.u32 [#allocation2], 4
      %s21 = int_to_ptr.vmem [resolvable:$true] %s20
      %26 = dma.hbm_to_vmem [thread:$0]  %s19, 4096, %s21, [#allocation3], 128, 128, 8
    $region9: #{deep_mvn_forward.1} parent=1 // pred_fallthru
      _
    // Predicated region
    $region10: #{deep_mvn_forward.1} parent=1 // pred_check
      _
    $region11: #{deep_mvn_forward.1} parent=1 // pred_check_branch
      %28 = sbr.rel (0) target = $region13
    $region12: #{deep_mvn_forward.1} parent=1 // pred_region
      _
    $region13: #{deep_mvn_forward.1} parent=1 // pred_fallthru
      _
    // Predicated region
    $region14: #{deep_mvn_forward.1} parent=1 // pred_check
      _
    $region15: #{deep_mvn_forward.1} parent=1 // pred_check_branch
      %30 = sbr.rel (0) target = $region17
    $region16: #{deep_mvn_forward.1} parent=1 // pred_region
      %32 = vsyncadd [#allocation5], 0
      %s33 = sshll.u32 %s3, 4
      %s34 = int_to_ptr.hbm [resolvable:$true] %s33
      %s35 = sshll.u32 [#allocation4], 4
      %s36 = int_to_ptr.vmem [resolvable:$true] %s35
      %41 = dma.hbm_to_vmem [thread:$0]  %s34, 2048, %s36, [#allocation5], 64, 64, 4
    $region17: #{deep_mvn_forward.1} parent=1 // pred_fallthru
      _
    // Predicated region
    $region18: #{deep_mvn_forward.1} parent=1 // pred_check
      _
    $region19: #{deep_mvn_forward.1} parent=1 // pred_check_branch
      %43 = sbr.rel (0) target = $region21
    $region20: #{deep_mvn_forward.1} parent=1 // pred_region
      _
    $region21: #{deep_mvn_forward.1} parent=1 // pred_fallthru
      _
    // Predicated region
    $region22: #{deep_mvn_forward.1} parent=1 // pred_check
      _
    $region23: #{deep_mvn_forward.1} parent=1 // pred_check_branch
      %45 = sbr.rel (0) target = $region25
    $region24: #{deep_mvn_forward.1} parent=1 // pred_region
      %47 = dma.done [#allocation3], 4096
    $region25: #{deep_mvn_forward.1} parent=1 // pred_fallthru
      _
    // Predicated region
    $region26: #{deep_mvn_forward.1} parent=1 // pred_check
      _
    $region27: #{deep_mvn_forward.1} parent=1 // pred_check_branch
      %49 = sbr.rel (0) target = $region29
    $region28: #{deep_mvn_forward.1} parent=1 // pred_region
      %51 = dma.done [#allocation5], 2048
    $region29: #{deep_mvn_forward.1} parent=1 // pred_fallthru
      _
    %v52 = vld [vmem:[%s0] sm:$0xff]
    %v53 = vld [vmem:[%s0 + $0x8] sm:$0xff]
    %v54 = vld [vmem:[#allocation2] sm:$0xff]
    %v55 = vld [vmem:[#allocation2 + $0x8] sm:$0xff]
    %v56 = vld [vmem:[#allocation2 + $0x10] sm:$0xff]
    %v57 = vld [vmem:[#allocation2 + $0x18] sm:$0xff]
    %v58 = vld [vmem:[#allocation2 + $0x20] sm:$0xff]
    %v59 = vld [vmem:[#allocation2 + $0x28] sm:$0xff]
    %v60 = vld [vmem:[#allocation2 + $0x30] sm:$0xff]
    %v61 = vld [vmem:[#allocation2 + $0x38] sm:$0xff]
    %v62 = vld [vmem:[#allocation2 + $0x40] sm:$0xff]
    %v63 = vld [vmem:[#allocation2 + $0x48] sm:$0xff]
    %v64 = vld [vmem:[#allocation2 + $0x50] sm:$0xff]
    %v65 = vld [vmem:[#allocation2 + $0x58] sm:$0xff]
    %v66 = vld [vmem:[#allocation2 + $0x60] sm:$0xff]
    %v67 = vld [vmem:[#allocation2 + $0x68] sm:$0xff]
    %v68 = vld [vmem:[#allocation2 + $0x70] sm:$0xff]
    %v69 = vld [vmem:[#allocation2 + $0x78] sm:$0xff]
    %v70 = vld [vmem:[#allocation2 + $0x80] sm:$0xff]
    %v71 = vld [vmem:[#allocation2 + $0x88] sm:$0xff]
    %v72 = vld [vmem:[#allocation2 + $0x90] sm:$0xff]
    %v73 = vld [vmem:[#allocation2 + $0x98] sm:$0xff]
    %v74 = vld [vmem:[#allocation2 + $0xa0] sm:$0xff]
    %v75 = vld [vmem:[#allocation2 + $0xa8] sm:$0xff]
    %v76 = vld [vmem:[#allocation2 + $0xb0] sm:$0xff]
    %v77 = vld [vmem:[#allocation2 + $0xb8] sm:$0xff]
    %v78 = vld [vmem:[#allocation2 + $0xc0] sm:$0xff]
    %v79 = vld [vmem:[#allocation2 + $0xc8] sm:$0xff]
    %v80 = vld [vmem:[#allocation2 + $0xd0] sm:$0xff]
    %v81 = vld [vmem:[#allocation2 + $0xd8] sm:$0xff]
    %v82 = vld [vmem:[#allocation2 + $0xe0] sm:$0xff]
    %v83 = vld [vmem:[#allocation2 + $0xe8] sm:$0xff]
    %v84 = vld [vmem:[#allocation2 + $0xf0] sm:$0xff]
    %v85 = vld [vmem:[#allocation2 + $0xf8] sm:$0xff]
    %v86 = vld [vmem:[%s2] sm:$0x3]
    %v88 = vperm.slane %v86, 0
    %v89 = vperm.slane %v86, 1
    %v94 = vunpack.c.l.b16 %v52
    %v95 = vunpack.c.h.b16 %v52
    %v96 = vunpack.c.l.b16 %v53
    %v97 = vunpack.c.h.b16 %v53
    %v98 = vpack.c.b16 %v96, %v94
    %v99 = vpack.c.b16 %v97, %v95
    %v134 = vunpack.c.l.b16 %v54
    %v135 = vunpack.c.h.b16 %v54
    %v136 = vunpack.c.l.b16 %v55
    %v137 = vunpack.c.h.b16 %v55
    %v138 = vunpack.c.l.b16 %v56
    %v139 = vunpack.c.h.b16 %v56
    %v140 = vunpack.c.l.b16 %v57
    %v141 = vunpack.c.h.b16 %v57
    %v142 = vunpack.c.l.b16 %v58
    %v143 = vunpack.c.h.b16 %v58
    %v144 = vunpack.c.l.b16 %v59
    %v145 = vunpack.c.h.b16 %v59
    %v146 = vunpack.c.l.b16 %v60
    %v147 = vunpack.c.h.b16 %v60
    %v148 = vunpack.c.l.b16 %v61
    %v149 = vunpack.c.h.b16 %v61
    %v150 = vunpack.c.l.b16 %v62
    %v151 = vunpack.c.h.b16 %v62
    %v152 = vunpack.c.l.b16 %v63
    %v153 = vunpack.c.h.b16 %v63
    %v154 = vunpack.c.l.b16 %v64
    %v155 = vunpack.c.h.b16 %v64
    %v156 = vunpack.c.l.b16 %v65
    %v157 = vunpack.c.h.b16 %v65
    %v158 = vunpack.c.l.b16 %v66
    %v159 = vunpack.c.h.b16 %v66
    %v160 = vunpack.c.l.b16 %v67
    %v161 = vunpack.c.h.b16 %v67
    %v162 = vunpack.c.l.b16 %v68
    %v163 = vunpack.c.h.b16 %v68
    %v164 = vunpack.c.l.b16 %v69
    %v165 = vunpack.c.h.b16 %v69
    %v166 = vunpack.c.l.b16 %v70
    %v167 = vunpack.c.h.b16 %v70
    %v168 = vunpack.c.l.b16 %v71
    %v169 = vunpack.c.h.b16 %v71
    %v170 = vunpack.c.l.b16 %v72
    %v171 = vunpack.c.h.b16 %v72
    %v172 = vunpack.c.l.b16 %v73
    %v173 = vunpack.c.h.b16 %v73
    %v174 = vunpack.c.l.b16 %v74
    %v175 = vunpack.c.h.b16 %v74
    %v176 = vunpack.c.l.b16 %v75
    %v177 = vunpack.c.h.b16 %v75
    %v178 = vunpack.c.l.b16 %v76
    %v179 = vunpack.c.h.b16 %v76
    %v180 = vunpack.c.l.b16 %v77
    %v181 = vunpack.c.h.b16 %v77
    %v182 = vunpack.c.l.b16 %v78
    %v183 = vunpack.c.h.b16 %v78
    %v184 = vunpack.c.l.b16 %v79
    %v185 = vunpack.c.h.b16 %v79
    %v186 = vunpack.c.l.b16 %v80
    %v187 = vunpack.c.h.b16 %v80
    %v188 = vunpack.c.l.b16 %v81
    %v189 = vunpack.c.h.b16 %v81
    %v190 = vunpack.c.l.b16 %v82
    %v191 = vunpack.c.h.b16 %v82
    %v192 = vunpack.c.l.b16 %v83
    %v193 = vunpack.c.h.b16 %v83
    %v194 = vunpack.c.l.b16 %v84
    %v195 = vunpack.c.h.b16 %v84
    %v196 = vunpack.c.l.b16 %v85
    %v197 = vunpack.c.h.b16 %v85
    %v198 = vpack.c.b16 %v136, %v134
    %v199 = vpack.c.b16 %v137, %v135
    %v200 = vpack.c.b16 %v140, %v138
    %v201 = vpack.c.b16 %v141, %v139
    %v202 = vpack.c.b16 %v144, %v142
    %v203 = vpack.c.b16 %v145, %v143
    %v204 = vpack.c.b16 %v148, %v146
    %v205 = vpack.c.b16 %v149, %v147
    %v206 = vpack.c.b16 %v152, %v150
    %v207 = vpack.c.b16 %v153, %v151
    %v208 = vpack.c.b16 %v156, %v154
    %v209 = vpack.c.b16 %v157, %v155
    %v210 = vpack.c.b16 %v160, %v158
    %v211 = vpack.c.b16 %v161, %v159
    %v212 = vpack.c.b16 %v164, %v162
    %v213 = vpack.c.b16 %v165, %v163
    %v214 = vpack.c.b16 %v168, %v166
    %v215 = vpack.c.b16 %v169, %v167
    %v216 = vpack.c.b16 %v172, %v170
    %v217 = vpack.c.b16 %v173, %v171
    %v218 = vpack.c.b16 %v176, %v174
    %v219 = vpack.c.b16 %v177, %v175
    %v220 = vpack.c.b16 %v180, %v178
    %v221 = vpack.c.b16 %v181, %v179
    %v222 = vpack.c.b16 %v184, %v182
    %v223 = vpack.c.b16 %v185, %v183
    %v224 = vpack.c.b16 %v188, %v186
    %v225 = vpack.c.b16 %v189, %v187
    %v226 = vpack.c.b16 %v192, %v190
    %v227 = vpack.c.b16 %v193, %v191
    %v228 = vpack.c.b16 %v196, %v194
    %v229 = vpack.c.b16 %v197, %v195
    %262 = vmatpush.bf16.msra.mxu0 %v212
    %263 = vmatpush.bf16.msra.mxu0 %v210
    %264 = vmatpush.bf16.msra.mxu0 %v208
    %265 = vmatpush.bf16.msra.mxu0 %v206
    %266 = vmatpush.bf16.msra.mxu0 %v204
    %267 = vmatpush.bf16.msra.mxu0 %v202
    %268 = vmatpush.bf16.msra.mxu0 %v200
    %269 = vmatpush.bf16.msra.mxu0 %v198
    %270 = vmatmul.bf16.gmra.mxu0 %v98
    %v271 = vpop.f32.mrf.mxu0
    %v272 = vadd.f32 %v88, %v271
    %v273 = vpop.f32.mrf.mxu0
    %v274 = vadd.f32 %v88, %v273
    %275 = vdwg.mxu0
    %276 = vmatpush.bf16.msra.mxu0 %v228
    %277 = vmatpush.bf16.msra.mxu0 %v226
    %278 = vmatpush.bf16.msra.mxu0 %v224
    %279 = vmatpush.bf16.msra.mxu0 %v222
    %280 = vmatpush.bf16.msra.mxu0 %v220
    %281 = vmatpush.bf16.msra.mxu0 %v218
    %282 = vmatpush.bf16.msra.mxu0 %v216
    %283 = vmatpush.bf16.msra.mxu0 %v214
    %284 = vmatmul.bf16.gmra.mxu0 %v99
    %v285 = vpop.f32.mrf.mxu0
    %v286 = vadd.f32 %v272, %v285
    %v287 = vpop.f32.mrf.mxu0
    %v288 = vadd.f32 %v274, %v287
    %289 = vdwg.mxu0
    %290 = vmatpush.bf16.msra.mxu0 %v213
    %291 = vmatpush.bf16.msra.mxu0 %v211
    %292 = vmatpush.bf16.msra.mxu0 %v209
    %293 = vmatpush.bf16.msra.mxu0 %v207
    %294 = vmatpush.bf16.msra.mxu0 %v205
    %295 = vmatpush.bf16.msra.mxu0 %v203
    %296 = vmatpush.bf16.msra.mxu0 %v201
    %297 = vmatpush.bf16.msra.mxu0 %v199
    %298 = vmatmul.bf16.gmra.mxu0 %v98
    %v299 = vpop.f32.mrf.mxu0
    %v300 = vadd.f32 %v89, %v299
    %v301 = vpop.f32.mrf.mxu0
    %v302 = vadd.f32 %v89, %v301
    %303 = vdwg.mxu0
    %304 = vmatpush.bf16.msra.mxu0 %v229
    %305 = vmatpush.bf16.msra.mxu0 %v227
    %306 = vmatpush.bf16.msra.mxu0 %v225
    %307 = vmatpush.bf16.msra.mxu0 %v223
    %308 = vmatpush.bf16.msra.mxu0 %v221
    %309 = vmatpush.bf16.msra.mxu0 %v219
    %310 = vmatpush.bf16.msra.mxu0 %v217
    %311 = vmatpush.bf16.msra.mxu0 %v215
    %312 = vmatmul.bf16.gmra.mxu0 %v99
    %v313 = vpop.f32.mrf.mxu0
    %v314 = vadd.f32 %v300, %v313
    %v315 = vpop.f32.mrf.mxu0
    %v316 = vadd.f32 %v302, %v315
    %317 = vdwg.mxu0
    %v318 = vmax.f32 %v286, 0.0
    %v319 = vmax.f32 %v314, 0.0
    %v320 = vmax.f32 %v288, 0.0
    %v321 = vmax.f32 %v316, 0.0
    %v322 = vpack.c.bf16 %v320, %v318
    %v323 = vpack.c.bf16 %v321, %v319
    %v324 = vld [vmem:[#allocation4] sm:$0xf]
    %v325 = vld [vmem:[#allocation4 + $0x4] sm:$0xf]
    %v326 = vld [vmem:[#allocation4 + $0x8] sm:$0xf]
    %v327 = vld [vmem:[#allocation4 + $0xc] sm:$0xf]
    %v328 = vld [vmem:[#allocation4 + $0x10] sm:$0xf]
    %v329 = vld [vmem:[#allocation4 + $0x14] sm:$0xf]
    %v330 = vld [vmem:[#allocation4 + $0x18] sm:$0xf]
    %v331 = vld [vmem:[#allocation4 + $0x1c] sm:$0xf]
    %v332 = vld [vmem:[#allocation4 + $0x20] sm:$0xf]
    %v333 = vld [vmem:[#allocation4 + $0x24] sm:$0xf]
    %v334 = vld [vmem:[#allocation4 + $0x28] sm:$0xf]
    %v335 = vld [vmem:[#allocation4 + $0x2c] sm:$0xf]
    %v336 = vld [vmem:[#allocation4 + $0x30] sm:$0xf]
    %v337 = vld [vmem:[#allocation4 + $0x34] sm:$0xf]
    %v338 = vld [vmem:[#allocation4 + $0x38] sm:$0xf]
    %v339 = vld [vmem:[#allocation4 + $0x3c] sm:$0xf]
    %v340 = vld [vmem:[#allocation4 + $0x40] sm:$0xf]
    %v341 = vld [vmem:[#allocation4 + $0x44] sm:$0xf]
    %v342 = vld [vmem:[#allocation4 + $0x48] sm:$0xf]
    %v343 = vld [vmem:[#allocation4 + $0x4c] sm:$0xf]
    %v344 = vld [vmem:[#allocation4 + $0x50] sm:$0xf]
    %v345 = vld [vmem:[#allocation4 + $0x54] sm:$0xf]
    %v346 = vld [vmem:[#allocation4 + $0x58] sm:$0xf]
    %v347 = vld [vmem:[#allocation4 + $0x5c] sm:$0xf]
    %v348 = vld [vmem:[#allocation4 + $0x60] sm:$0xf]
    %v349 = vld [vmem:[#allocation4 + $0x64] sm:$0xf]
    %v350 = vld [vmem:[#allocation4 + $0x68] sm:$0xf]
    %v351 = vld [vmem:[#allocation4 + $0x6c] sm:$0xf]
    %v352 = vld [vmem:[#allocation4 + $0x70] sm:$0xf]
    %v353 = vld [vmem:[#allocation4 + $0x74] sm:$0xf]
    %v354 = vld [vmem:[#allocation4 + $0x78] sm:$0xf]
    %v355 = vld [vmem:[#allocation4 + $0x7c] sm:$0xf]
    %v356 = vld [vmem:[%s4] sm:$0x1]
    %v358 = vperm.slane %v356, 0
    %v392 = vunpack.c.l.b16 %v324
    %v393 = vunpack.c.l.b16 %v325
    %v394 = vunpack.c.l.b16 %v326
    %v395 = vunpack.c.l.b16 %v327
    %v396 = vunpack.c.l.b16 %v328
    %v397 = vunpack.c.l.b16 %v329
    %v398 = vunpack.c.l.b16 %v330
    %v399 = vunpack.c.l.b16 %v331
    %v400 = vunpack.c.l.b16 %v332
    %v401 = vunpack.c.l.b16 %v333
    %v402 = vunpack.c.l.b16 %v334
    %v403 = vunpack.c.l.b16 %v335
    %v404 = vunpack.c.l.b16 %v336
    %v405 = vunpack.c.l.b16 %v337
    %v406 = vunpack.c.l.b16 %v338
    %v407 = vunpack.c.l.b16 %v339
    %v408 = vunpack.c.l.b16 %v340
    %v409 = vunpack.c.l.b16 %v341
    %v410 = vunpack.c.l.b16 %v342
    %v411 = vunpack.c.l.b16 %v343
    %v412 = vunpack.c.l.b16 %v344
    %v413 = vunpack.c.l.b16 %v345
    %v414 = vunpack.c.l.b16 %v346
    %v415 = vunpack.c.l.b16 %v347
    %v416 = vunpack.c.l.b16 %v348
    %v417 = vunpack.c.l.b16 %v349
    %v418 = vunpack.c.l.b16 %v350
    %v419 = vunpack.c.l.b16 %v351
    %v420 = vunpack.c.l.b16 %v352
    %v421 = vunpack.c.l.b16 %v353
    %v422 = vunpack.c.l.b16 %v354
    %v423 = vunpack.c.l.b16 %v355
    %v424 = vpack.c.b16 %v393, %v392
    %v425 = vpack.c.b16 %v395, %v394
    %v426 = vpack.c.b16 %v397, %v396
    %v427 = vpack.c.b16 %v399, %v398
    %v428 = vpack.c.b16 %v401, %v400
    %v429 = vpack.c.b16 %v403, %v402
    %v430 = vpack.c.b16 %v405, %v404
    %v431 = vpack.c.b16 %v407, %v406
    %v432 = vpack.c.b16 %v409, %v408
    %v433 = vpack.c.b16 %v411, %v410
    %v434 = vpack.c.b16 %v413, %v412
    %v435 = vpack.c.b16 %v415, %v414
    %v436 = vpack.c.b16 %v417, %v416
    %v437 = vpack.c.b16 %v419, %v418
    %v438 = vpack.c.b16 %v421, %v420
    %v439 = vpack.c.b16 %v423, %v422
    %456 = vmatpush.bf16.msra.mxu0 %v431
    %457 = vmatpush.bf16.msra.mxu0 %v430
    %458 = vmatpush.bf16.msra.mxu0 %v429
    %459 = vmatpush.bf16.msra.mxu0 %v428
    %460 = vmatpush.bf16.msra.mxu0 %v427
    %461 = vmatpush.bf16.msra.mxu0 %v426
    %462 = vmatpush.bf16.msra.mxu0 %v425
    %463 = vmatpush.bf16.msra.mxu0 %v424
    %464 = vmatmul.bf16.gmra.mxu0 %v322
    %v465 = vpop.f32.mrf.mxu0
    %v466 = vadd.f32 %v358, %v465
    %v467 = vpop.f32.mrf.mxu0
    %v468 = vadd.f32 %v358, %v467
    %469 = vdwg.mxu0
    %470 = vmatpush.bf16.msra.mxu0 %v439
    %471 = vmatpush.bf16.msra.mxu0 %v438
    %472 = vmatpush.bf16.msra.mxu0 %v437
    %473 = vmatpush.bf16.msra.mxu0 %v436
    %474 = vmatpush.bf16.msra.mxu0 %v435
    %475 = vmatpush.bf16.msra.mxu0 %v434
    %476 = vmatpush.bf16.msra.mxu0 %v433
    %477 = vmatpush.bf16.msra.mxu0 %v432
    %478 = vmatmul.bf16.gmra.mxu0 %v323
    %v479 = vpop.f32.mrf.mxu0
    %v480 = vadd.f32 %v466, %v479
    %v481 = vpop.f32.mrf.mxu0
    %v482 = vadd.f32 %v468, %v481
    %483 = vdwg.mxu0
    %v484 = vlaneseq
    %v485 = vand.u32 %v484, 127
    %vm486 = vcmp.ge.s32.totalorder %v485, 10
    %vm487 = vcmp.lt.s32.totalorder %v485, 14
    %vm488 = vmand %vm486, %vm487
    %v489 = vmax.f32 %v480, 0.0
    %v490 = vmax.f32 %v482, 0.0
    %vm491 = vcmp.ne.f32.partialorder %v480, %v480
    %vm492 = vcmp.ne.f32.partialorder %v482, %v482
    %v493 = vadd.f32 %v480, 0.0
    %v494 = vadd.f32 %v482, 0.0
    %v495 = vand.u32 2147483647, %v480
    %v496 = vand.u32 2147483647, %v482
    %v497 = vsub.f32 0.0, %v495
    %v498 = vsub.f32 0.0, %v496
    %v499 = vmul.f32 %v497, 1.442695
    %v500 = vpow.pop %v499
    %v501 = vmul.f32 %v498, 1.442695
    %v502 = vpow.pop %v501
    %v503 = vadd.f32 %v500, 1.0
    %v504 = vlog2.pop %v503
    %v505 = vmul.f32 %v504, 0.6931472
    %v506 = vmul.f32 -0.5, %v500
    %v507 = vadd.f32 %v506, 1.0
    %v508 = vmul.f32 %v507, %v500
    %v509 = vand.u32 2147483647, %v500
    %vm510 = vcmp.lt.f32.partialorder %v509, 0.0004427343
    %v511 = vsel %vm510, %v508, %v505
    %v512 = vadd.f32 %v502, 1.0
    %v513 = vlog2.pop %v512
    %v514 = vmul.f32 %v513, 0.6931472
    %v515 = vmul.f32 -0.5, %v502
    %v516 = vadd.f32 %v515, 1.0
    %v517 = vmul.f32 %v516, %v502
    %v518 = vand.u32 2147483647, %v502
    %vm519 = vcmp.lt.f32.partialorder %v518, 0.0004427343
    %v520 = vsel %vm519, %v517, %v514
    %v521 = vadd.f32 %v489, %v511
    %v522 = vadd.f32 %v490, %v520
    %v523 = vsel %vm491, %v493, %v521
    %v524 = vsel %vm492, %v494, %v522
    %v525 = vsel %vm488, %v523, %v480
    %v526 = vsel %vm488, %v524, %v482
    %527 = vst [vmem:[%s5] sm:$0xff] %v525
    %528 = vst [vmem:[%s5 + $0x8] sm:$0xff] %v526
    // Predicated region
    $region30: #{deep_mvn_forward.1} parent=1 // pred_check
      _
    $region31: #{deep_mvn_forward.1} parent=1 // pred_check_branch
      %530 = sbr.rel (0) target = $region33
    $region32: #{deep_mvn_forward.1} parent=1 // pred_region
      _
    $region33: #{deep_mvn_forward.1} parent=1 // pred_fallthru
      _
    // Predicated region
    $region34: #{deep_mvn_forward.1} parent=1 // pred_check
      _
    $region35: #{deep_mvn_forward.1} parent=1 // pred_check_branch
      %532 = sbr.rel (0) target = $region37
    $region36: #{deep_mvn_forward.1} parent=1 // pred_region
      _
    $region37: #{deep_mvn_forward.1} parent=1 // pred_fallthru
      _
    %533 = vsyncpa [#allocation3], 1
    %534 = vsyncpa [#allocation5], 1

</llo_original>
